<compile_context>
chip_gen: v7x
topology: tpu7x:2x2x1
jax: 0.10.0
libtpu: 0.0.40
codegen_flags: <defaults>
</compile_context>

<pallas_src>
import jax
import jax.numpy as jnp
from jax import lax
from jax.experimental import pallas as pl
from jax.experimental.pallas import tpu as pltpu


# ----------------------------------------------------------------------------
# Pallas kernel
# ----------------------------------------------------------------------------
def _make_eegnet_kernel(B, L, C1, C2, N):
    assert L & (L - 1) == 0, "in-kernel index math uses bitwise &/>> by L (power of 2)"
    # TODO(synk): support non-power-of-two seq_len (needs vector integer div/mod by L).
    BL = B * L
    LN = N * L
    LOG2L = L.bit_length() - 1
    f32 = jnp.float32
    bf16 = jnp.bfloat16

    def kernel(xcat_ref, w1_ref, w2_ref, wc_ref, shifts_ref, out_ref):
        # xcat_ref:   (B*L, 3*Cin) bf16  im2col'd input [prev|center|next], row r = b*L + t
        # w1_ref:     (3*Cin, C1)  bf16  conv1 weight, BN1 scale folded in, tap-major rows
        # w2_ref:     (3*C1, C2)   bf16  conv2 weight, BN2 scale folded in
        # wc_ref:     (C2, N*L)    bf16  fc weight, column j = n*L + t'
        # shifts_ref: (3, SH_W)    f32   packed rows: [sh1 | sh2 | fc_bias], zero padded
        # out_ref:    (B, N)       f32
        shifts = shifts_ref[...]
        sh1 = shifts[0:1, 0:C1]
        sh2 = shifts[1:2, 0:C2]
        fcb = shifts[2:3, 0:N]

        # ---- conv1 + BN1 + ReLU: one im2col matmul (im2col built in the wrapper) ----
        h1 = jnp.dot(xcat_ref[...], w1_ref[...], preferred_element_type=f32)
        h1 = jnp.maximum(h1 + sh1, 0.0)                                   # (BL, C1) f32

        # ---- conv2 + BN2 + ReLU: shifted operands via pltpu.roll (XLU slot) ----------
        # Boundary masks generated in-kernel: t(r) = r & (L-1); zero rows where the roll
        # wrapped across a sequence (or batch) boundary.
        t_r = lax.broadcasted_iota(jnp.int32, (BL, C1), 0) & (L - 1)
        mprev = (t_r != 0).astype(f32)
        mnext = (t_r != (L - 1)).astype(f32)
        prev = pltpu.roll(h1, shift=1, axis=0) * mprev        # prev[r] = h1[r-1]
        nxt = pltpu.roll(h1, shift=BL - 1, axis=0) * mnext    # nxt[r]  = h1[r+1]
        # Single concatenated MXU push (suits v5e/v6e MRF; see header note for v7x).
        hcat = jnp.concatenate([prev, h1, nxt], axis=-1).astype(bf16)     # (BL, 3*C1)
        h2 = jnp.dot(hcat, w2_ref[...], preferred_element_type=f32)
        h2 = jnp.maximum(h2 + sh2, 0.0)                                   # (BL, C2) f32

        # ---- Dropout: identity at inference ----
        # ---- FC over PyTorch-flattened (c*L + t) features, no in-kernel reshape ----
        #   z[r, n*L + t'] = sum_c h2[r, c] * fc_w[n, c*L + t']
        z = jnp.dot(h2.astype(bf16), wc_ref[...], preferred_element_type=f32)   # (BL, N*L)
        row = lax.broadcasted_iota(jnp.int32, (BL, LN), 0)
        col = lax.broadcasted_iota(jnp.int32, (BL, LN), 1)
        z = jnp.where((col & (L - 1)) == (row & (L - 1)), z, 0.0)         # keep t' == t(r)
        # Pick the surviving column per class: zn[r, n] = z[r, n*L + t(r)].
        bsel = ((lax.broadcasted_iota(jnp.int32, (LN, N), 0) >> LOG2L)
                == lax.broadcasted_iota(jnp.int32, (LN, N), 1)).astype(f32)
        zn = jnp.dot(z, bsel, preferred_element_type=f32)                 # (BL, N)
        # Sum the rows belonging to each batch element.
        asel = (lax.broadcasted_iota(jnp.int32, (B, BL), 0)
                == (lax.broadcasted_iota(jnp.int32, (B, BL), 1) >> LOG2L)).astype(f32)
        out = jnp.dot(asel, zn, preferred_element_type=f32)               # (B, N)
        out_ref[...] = out + fcb                                          # single store

    return kernel


# ----------------------------------------------------------------------------
# One-time parameter folding (hoisted out of the per-call path)
# ----------------------------------------------------------------------------
def prepare_eegnet_params(params, eps=1e-5):
    """Fold conv bias + eval-mode BatchNorm into the weights, reorder for the kernel,
    cast MXU operands to bf16, and pack the small shifts. Call ONCE per model."""
    (conv1_w, conv1_b, g1, be1, m1, v1,
     conv2_w, conv2_b, g2, be2, m2, v2,
     fc_w, fc_b) = params
    f32, bf16 = jnp.float32, jnp.bfloat16

    C1, Cin, K1 = conv1_w.shape
    C2, C1_, K2 = conv2_w.shape
    N, F = fc_w.shape
    assert K1 == 3 and K2 == 3 and C1_ == C1 and F % C2 == 0, \
        "kernel hardcodes kernel_size=3, stride=1, padding=1"
    L = F // C2

    s1 = g1 / jnp.sqrt(v1 + eps)
    s2 = g2 / jnp.sqrt(v2 + eps)
    # (Cout, Cin, 3) -> (3, Cin, Cout) * BN scale -> (3*Cin, Cout); tap-major rows match
    # the [prev | center | next] im2col column order (tap k uses x[t + k - 1]).
    w1 = (jnp.transpose(conv1_w, (2, 1, 0)) * s1[None, None, :]).reshape(3 * Cin, C1).astype(bf16)
    w2 = (jnp.transpose(conv2_w, (2, 1, 0)) * s2[None, None, :]).reshape(3 * C1, C2).astype(bf16)
    sh1 = ((conv1_b - m1) * s1 + be1).astype(f32)
    sh2 = ((conv2_b - m2) * s2 + be2).astype(f32)

    # fc.weight is (N, C2*L) with flatten index c*L + t (PyTorch NCL flatten).
    # wc[c, n*L + t] = fc_w[n, c*L + t]  (n-major columns keep in-kernel index math in L).
    wc = jnp.transpose(fc_w.reshape(N, C2, L), (1, 0, 2)).reshape(C2, N * L).astype(bf16)

    # Pack the tiny per-channel shifts into one operand (one DMA instead of three).
    sh_w = max(C1, C2, N)
    shifts = jnp.zeros((3, sh_w), f32)
    shifts = shifts.at[0, :C1].set(sh1)
    shifts = shifts.at[1, :C2].set(sh2)
    shifts = shifts.at[2, :N].set(fc_b.astype(f32))
    return w1, w2, wc, shifts


# ----------------------------------------------------------------------------
# Per-call wrapper
# ----------------------------------------------------------------------------
def eegnet_forward(x_ncl, prepared):
    """x_ncl: (B, Cin, L) float32, the layout PyTorch Conv1d expects."""
    w1, w2, wc, shifts = prepared
    B, Cin, L = x_ncl.shape
    C1 = w1.shape[1]
    C2 = w2.shape[1]
    N = wc.shape[1] // L
    BL = B * L

    # Channels-last rows r = b*L + t, with wrapper-side im2col for conv1:
    # xcat[r] = [x[b,:,t-1] | x[b,:,t] | x[b,:,t+1]]  (zero padded at sequence boundaries).
    xl = jnp.transpose(x_ncl, (0, 2, 1)).astype(jnp.float32)          # (B, L, Cin)
    xprev = jnp.pad(xl, ((0, 0), (1, 0), (0, 0)))[:, :L, :]
    xnext = jnp.pad(xl, ((0, 0), (0, 1), (0, 0)))[:, 1:, :]
    xcat = jnp.concatenate([xprev, xl, xnext], axis=-1).reshape(BL, 3 * Cin).astype(jnp.bfloat16)

    vmem = pl.BlockSpec(memory_space=pltpu.MemorySpace.VMEM)
    return pl.pallas_call(
        _make_eegnet_kernel(B, L, C1, C2, N),
        out_shape=jax.ShapeDtypeStruct((B, N), jnp.float32),
        in_specs=[vmem] * 5,
        out_specs=vmem,
    )(xcat, w1, w2, wc, shifts)


# ----------------------------------------------------------------------------
# Pure-JAX reference (eval-mode forward, matches PyTorch semantics, f32)
# ----------------------------------------------------------------------------
def eegnet_reference(x_ncl, params):
    (conv1_w, conv1_b, g1, be1, m1, v1,
     conv2_w, conv2_b, g2, be2, m2, v2,
     fc_w, fc_b) = params
    eps = 1e-5

    def conv1d(x, w, b):
        y = lax.conv_general_dilated(
            x, w, window_strides=(1,), padding=((1, 1),),
            dimension_numbers=("NCH", "OIH", "NCH"))
        return y + b[None, :, None]

    def bn(x, g, be, m, v):
        return (x - m[None, :, None]) * (g / jnp.sqrt(v + eps))[None, :, None] + be[None, :, None]

    y = jnp.maximum(bn(conv1d(x_ncl, conv1_w, conv1_b), g1, be1, m1, v1), 0.0)
    y = jnp.maximum(bn(conv1d(y, conv2_w, conv2_b), g2, be2, m2, v2), 0.0)
    flat = y.reshape(y.shape[0], -1)                    # (B, C2*L), index = c*L + t
    return flat @ fc_w.T + fc_b[None, :]


# ----------------------------------------------------------------------------
# Main
# ----------------------------------------------------------------------------
if __name__ == "__main__":
    # Small shapes consistent with the module.
    B, Cin, L = 2, 4, 16          # batch, in_channels, seq_len
    C1, C2, N = 32, 64, 3         # conv1_channels, conv2_channels, num_classes

    key = jax.random.PRNGKey(0)
    ks = jax.random.split(key, 16)

    x = jax.random.normal(ks[0], (B, Cin, L), jnp.float32)

    conv1_w = 0.1 * jax.random.normal(ks[1], (C1, Cin, 3), jnp.float32)
    conv1_b = 0.1 * jax.random.normal(ks[2], (C1,), jnp.float32)
    g1 = 1.0 + 0.1 * jax.random.normal(ks[3], (C1,), jnp.float32)
    be1 = 0.1 * jax.random.normal(ks[4], (C1,), jnp.float32)
    m1 = 0.1 * jax.random.normal(ks[5], (C1,), jnp.float32)
    v1 = jax.random.uniform(ks[6], (C1,), jnp.float32, 0.5, 1.5)

    conv2_w = 0.1 * jax.random.normal(ks[7], (C2, C1, 3), jnp.float32)
    conv2_b = 0.1 * jax.random.normal(ks[8], (C2,), jnp.float32)
    g2 = 1.0 + 0.1 * jax.random.normal(ks[9], (C2,), jnp.float32)
    be2 = 0.1 * jax.random.normal(ks[10], (C2,), jnp.float32)
    m2 = 0.1 * jax.random.normal(ks[11], (C2,), jnp.float32)
    v2 = jax.random.uniform(ks[12], (C2,), jnp.float32, 0.5, 1.5)

    fc_w = 0.05 * jax.random.normal(ks[13], (N, C2 * L), jnp.float32)
    fc_b = 0.1 * jax.random.normal(ks[14], (N,), jnp.float32)

    params = (conv1_w, conv1_b, g1, be1, m1, v1,
              conv2_w, conv2_b, g2, be2, m2, v2,
              fc_w, fc_b)

    # One-time folding (hoisted out of the hot path), then the jitted per-call forward.
    prepared = jax.tree_util.tree_map(jax.block_until_ready, prepare_eegnet_params(params))
    fwd = jax.jit(eegnet_forward)

    out = jax.block_until_ready(fwd(x, prepared))
    ref = jax.block_until_ready(eegnet_reference(x, params))

    assert out.shape == (B, N), out.shape
    # bf16 MXU operands with f32 accumulation -> loosened tolerance vs. the f32 reference.
    if not jnp.allclose(out, ref, atol=5e-2, rtol=5e-2):
        raise AssertionError(f"mismatch: max abs err {jnp.max(jnp.abs(out - ref))}")

    print("KERNEL_OK")
</pallas_src>

<mosaic_0001>
module attributes {stable_mosaic.version = 11 : i64} {
  func.func @kernel(%arg0: memref<32x12xbf16, #tpu.memory_space<vmem>>, %arg1: memref<12x32xbf16, #tpu.memory_space<vmem>>, %arg2: memref<96x64xbf16, #tpu.memory_space<vmem>>, %arg3: memref<64x48xbf16, #tpu.memory_space<vmem>>, %arg4: memref<3x64xf32, #tpu.memory_space<vmem>>, %arg5: memref<2x3xf32, #tpu.memory_space<vmem>>) attributes {dimension_semantics = [], scalar_prefetch = 0 : i64, scratch_operands = 0 : i64, tpu.core_type = #tpu.core_type<tc>} {
    %c0 = arith.constant 0 : index
    %c0_0 = arith.constant 0 : index
    %0 = vector.load %arg4[%c0, %c0_0] : memref<3x64xf32, #tpu.memory_space<vmem>>, vector<3x64xf32>
    %1 = vector.extract_strided_slice %0 {offsets = [0, 0], sizes = [1, 32], strides = [1, 1]} : vector<3x64xf32> to vector<1x32xf32>
    %2 = vector.extract_strided_slice %0 {offsets = [1, 0], sizes = [1, 64], strides = [1, 1]} : vector<3x64xf32> to vector<1x64xf32>
    %3 = vector.extract_strided_slice %0 {offsets = [2, 0], sizes = [1, 3], strides = [1, 1]} : vector<3x64xf32> to vector<1x3xf32>
    %c0_1 = arith.constant 0 : index
    %c0_2 = arith.constant 0 : index
    %4 = vector.load %arg0[%c0_1, %c0_2] : memref<32x12xbf16, #tpu.memory_space<vmem>>, vector<32x12xbf16>
    %c0_3 = arith.constant 0 : index
    %c0_4 = arith.constant 0 : index
    %5 = vector.load %arg1[%c0_3, %c0_4] : memref<12x32xbf16, #tpu.memory_space<vmem>>, vector<12x32xbf16>
    %cst = arith.constant dense<0.000000e+00> : vector<32x32xf32>
    %6 = tpu.matmul %4, %5, %cst {dimension_numbers = #tpu.dot_dimension_numbers<[1], [0], [0], [1], [0, 0, 1, 1], [], []>} : vector<32x12xbf16>, vector<12x32xbf16>, vector<32x32xf32> -> vector<32x32xf32>
    %7 = vector.broadcast %1 : vector<1x32xf32> to vector<32x32xf32>
    %8 = arith.addf %6, %7 : vector<32x32xf32>
    %cst_5 = arith.constant 0.000000e+00 : f32
    %9 = vector.broadcast %cst_5 : f32 to vector<32x32xf32>
    %10 = arith.maximumf %8, %9 : vector<32x32xf32>
    %11 = tpu.iota {dimensions = array<i32: 0>} : vector<32x32xi32>
    %c15_i32 = arith.constant 15 : i32
    %12 = vector.broadcast %c15_i32 : i32 to vector<32x32xi32>
    %13 = arith.andi %11, %12 : vector<32x32xi32>
    %c0_i32 = arith.constant 0 : i32
    %14 = vector.broadcast %c0_i32 : i32 to vector<32x32xi32>
    %15 = arith.cmpi ne, %13, %14 : vector<32x32xi32>
    %16 = arith.extui %15 : vector<32x32xi1> to vector<32x32xi32>
    %17 = arith.sitofp %16 : vector<32x32xi32> to vector<32x32xf32>
    %c15_i32_6 = arith.constant 15 : i32
    %18 = vector.broadcast %c15_i32_6 : i32 to vector<32x32xi32>
    %19 = arith.cmpi ne, %13, %18 : vector<32x32xi32>
    %20 = arith.extui %19 : vector<32x32xi1> to vector<32x32xi32>
    %21 = arith.sitofp %20 : vector<32x32xi32> to vector<32x32xf32>
    %c1_i32 = arith.constant 1 : i32
    %22 = tpu.dynamic_rotate %10 by %c1_i32 dim 0 : vector<32x32xf32>, i32 -> vector<32x32xf32>
    %23 = arith.mulf %22, %17 : vector<32x32xf32>
    %c31_i32 = arith.constant 31 : i32
    %24 = tpu.dynamic_rotate %10 by %c31_i32 dim 0 : vector<32x32xf32>, i32 -> vector<32x32xf32>
    %25 = arith.mulf %24, %21 : vector<32x32xf32>
    %26 = tpu.concatenate %23, %10, %25 in 1 : vector<32x32xf32>, vector<32x32xf32>, vector<32x32xf32> -> vector<32x96xf32>
    %27 = arith.truncf %26 : vector<32x96xf32> to vector<32x96xbf16>
    %c0_7 = arith.constant 0 : index
    %c0_8 = arith.constant 0 : index
    %28 = vector.load %arg2[%c0_7, %c0_8] : memref<96x64xbf16, #tpu.memory_space<vmem>>, vector<96x64xbf16>
    %cst_9 = arith.constant dense<0.000000e+00> : vector<32x64xf32>
    %29 = tpu.matmul %27, %28, %cst_9 {dimension_numbers = #tpu.dot_dimension_numbers<[1], [0], [0], [1], [0, 0, 1, 1], [], []>} : vector<32x96xbf16>, vector<96x64xbf16>, vector<32x64xf32> -> vector<32x64xf32>
    %30 = vector.broadcast %2 : vector<1x64xf32> to vector<32x64xf32>
    %31 = arith.addf %29, %30 : vector<32x64xf32>
    %cst_10 = arith.constant 0.000000e+00 : f32
    %32 = vector.broadcast %cst_10 : f32 to vector<32x64xf32>
    %33 = arith.maximumf %31, %32 : vector<32x64xf32>
    %34 = arith.truncf %33 : vector<32x64xf32> to vector<32x64xbf16>
    %c0_11 = arith.constant 0 : index
    %c0_12 = arith.constant 0 : index
    %35 = vector.load %arg3[%c0_11, %c0_12] : memref<64x48xbf16, #tpu.memory_space<vmem>>, vector<64x48xbf16>
    %cst_13 = arith.constant dense<0.000000e+00> : vector<32x48xf32>
    %36 = tpu.matmul %34, %35, %cst_13 {dimension_numbers = #tpu.dot_dimension_numbers<[1], [0], [0], [1], [0, 0, 1, 1], [], []>} : vector<32x64xbf16>, vector<64x48xbf16>, vector<32x48xf32> -> vector<32x48xf32>
    %37 = tpu.iota {dimensions = array<i32: 0>} : vector<32x48xi32>
    %38 = tpu.iota {dimensions = array<i32: 1>} : vector<32x48xi32>
    %c15_i32_14 = arith.constant 15 : i32
    %39 = vector.broadcast %c15_i32_14 : i32 to vector<32x48xi32>
    %40 = arith.andi %38, %39 : vector<32x48xi32>
    %c15_i32_15 = arith.constant 15 : i32
    %41 = vector.broadcast %c15_i32_15 : i32 to vector<32x48xi32>
    %42 = arith.andi %37, %41 : vector<32x48xi32>
    %43 = arith.cmpi eq, %40, %42 : vector<32x48xi32>
    %cst_16 = arith.constant 0.000000e+00 : f32
    %44 = vector.broadcast %cst_16 : f32 to vector<32x48xf32>
    %45 = arith.select %43, %36, %44 : vector<32x48xi1>, vector<32x48xf32>
    %46 = tpu.iota {dimensions = array<i32: 0>} : vector<48x3xi32>
    %c4_i32 = arith.constant 4 : i32
    %47 = vector.broadcast %c4_i32 : i32 to vector<48x3xi32>
    %48 = arith.shrsi %46, %47 : vector<48x3xi32>
    %49 = tpu.iota {dimensions = array<i32: 1>} : vector<48x3xi32>
    %50 = arith.cmpi eq, %48, %49 : vector<48x3xi32>
    %51 = arith.extui %50 : vector<48x3xi1> to vector<48x3xi32>
    %52 = arith.sitofp %51 : vector<48x3xi32> to vector<48x3xf32>
    %cst_17 = arith.constant dense<0.000000e+00> : vector<32x3xf32>
    %53 = tpu.matmul %45, %52, %cst_17 {dimension_numbers = #tpu.dot_dimension_numbers<[1], [0], [0], [1], [0, 0, 1, 1], [], []>} : vector<32x48xf32>, vector<48x3xf32>, vector<32x3xf32> -> vector<32x3xf32>
    %54 = tpu.iota {dimensions = array<i32: 0>} : vector<2x32xi32>
    %55 = tpu.iota {dimensions = array<i32: 1>} : vector<2x32xi32>
    %c4_i32_18 = arith.constant 4 : i32
    %56 = vector.broadcast %c4_i32_18 : i32 to vector<2x32xi32>
    %57 = arith.shrsi %55, %56 : vector<2x32xi32>
    %58 = arith.cmpi eq, %54, %57 : vector<2x32xi32>
    %59 = arith.extui %58 : vector<2x32xi1> to vector<2x32xi32>
    %60 = arith.sitofp %59 : vector<2x32xi32> to vector<2x32xf32>
    %cst_19 = arith.constant dense<0.000000e+00> : vector<2x3xf32>
    %61 = tpu.matmul %60, %53, %cst_19 {dimension_numbers = #tpu.dot_dimension_numbers<[1], [0], [0], [1], [0, 0, 1, 1], [], []>} : vector<2x32xf32>, vector<32x3xf32>, vector<2x3xf32> -> vector<2x3xf32>
    %62 = vector.broadcast %3 : vector<1x3xf32> to vector<2x3xf32>
    %63 = arith.addf %61, %62 : vector<2x3xf32>
    %c0_20 = arith.constant 0 : index
    %c0_21 = arith.constant 0 : index
    %64 = vector.load %arg5[%c0_20, %c0_21] : memref<2x3xf32, #tpu.memory_space<vmem>>, vector<2x3xf32>
    tpu.vector_store %arg5[%c0_20, %c0_21], %63 {strides = array<i32>} : memref<2x3xf32, #tpu.memory_space<vmem>>, vector<2x3xf32>,
    return
  }
}

</mosaic_0001>

<llo_original>
// kernel: eegnet_forward.1
$region0: #{eegnet_forward.1}
  #allocation0 [shape = 'u32[]', space=smem, size = 0x4, offset = 0x4, fixed_abs, tag = 'smem constant byte address 0x4 - core index']
  #allocation1 [shape = 'u32[144,128]{1,0:T(1,128)}', space=vmem, size = 0x12000, scoped, tag = 'internal scratch']
  %s0 = inlined_call_operand.vmem [shape: bf16[32,12], index: 0, kind: input, shape index: {}]
  %s1 = inlined_call_operand.vmem [shape: bf16[12,32], index: 1, kind: input, shape index: {}]
  %s2 = inlined_call_operand.vmem [shape: bf16[96,64], index: 2, kind: input, shape index: {}]
  %s3 = inlined_call_operand.vmem [shape: bf16[64,48], index: 3, kind: input, shape index: {}]
  %s4 = inlined_call_operand.vmem [shape: f32[3,64], index: 4, kind: input, shape index: {}]
  %s5 = inlined_call_operand.hbm [shape: f32[2,3], index: 5, kind: output, shape index: {}]
  %s6 = sld [smem:[#allocation0]]
  $region30: #{eegnet_forward.1} parent=0
    _
  %s8 = ssub.s32 1, %s6
  %s9 = scalar_select 0, %s8, %s6
  $region1: #{eegnet_forward.1} parent=0
    #allocation2 [shape = 'u8[1024]{0}', space=vmem, size = 0x400, scoped, tag = 'output window, operand 0, single buffered']
    #allocation3 [shape = 's32[1]{0}', space=sflag, size = 0x4, scoped, tag = 'scoped memory for eegnet_forward.1']
    %10 = vsyncpa [#allocation3], 0
    // Predicated region
    $region2: #{eegnet_forward.1} parent=1 // pred_check
      _
    $region3: #{eegnet_forward.1} parent=1 // pred_check_branch
      %12 = sbr.rel (0) target = $region5
    $region4: #{eegnet_forward.1} parent=1 // pred_region
      _
    $region5: #{eegnet_forward.1} parent=1 // pred_fallthru
      _
    // Predicated region
    $region6: #{eegnet_forward.1} parent=1 // pred_check
      _
    $region7: #{eegnet_forward.1} parent=1 // pred_check_branch
      %14 = sbr.rel (0) target = $region9
    $region8: #{eegnet_forward.1} parent=1 // pred_region
      _
    $region9: #{eegnet_forward.1} parent=1 // pred_fallthru
      _
    // Predicated region
    $region10: #{eegnet_forward.1} parent=1 // pred_check
      _
    $region11: #{eegnet_forward.1} parent=1 // pred_check_branch
      %16 = sbr.rel (0) target = $region13
    $region12: #{eegnet_forward.1} parent=1 // pred_region
      _
    $region13: #{eegnet_forward.1} parent=1 // pred_fallthru
      _
    // Predicated region
    $region14: #{eegnet_forward.1} parent=1 // pred_check
      _
    $region15: #{eegnet_forward.1} parent=1 // pred_check_branch
      %18 = sbr.rel (0) target = $region17
    $region16: #{eegnet_forward.1} parent=1 // pred_region
      _
    $region17: #{eegnet_forward.1} parent=1 // pred_fallthru
      _
    // Predicated region
    $region18: #{eegnet_forward.1} parent=1 // pred_check
      _
    $region19: #{eegnet_forward.1} parent=1 // pred_check_branch
      %20 = sbr.rel (0) target = $region21
    $region20: #{eegnet_forward.1} parent=1 // pred_region
      _
    $region21: #{eegnet_forward.1} parent=1 // pred_fallthru
      _
    %v22 = vld [vmem:[%s4] sm:$0x7]
    %v23 = vld [vmem:[%s0] sm:$0xf]
    %v24 = vld [vmem:[%s0 + $0x4] sm:$0xf]
    %v25 = vld [vmem:[%s0 + $0x8] sm:$0xf]
    %v26 = vld [vmem:[%s0 + $0xc] sm:$0xf]
    %v27 = vld [vmem:[%s1] sm:$0xf]
    %v28 = vld [vmem:[%s1 + $0x4] sm:$0x3]
    %v29 = vlaneseq
    %v30 = vshrl.u32 %v29, 7
    %v31 = vsub.s32 0, %v30
    %v32 = vrot.slane %v22, %v31
    %v37 = vunpack.c.l.b16 %v23
    %v38 = vunpack.c.l.b16 %v24
    %v39 = vunpack.c.l.b16 %v25
    %v40 = vunpack.c.l.b16 %v26
    %v41 = vpack.c.b16 %v38, %v37
    %v42 = vpack.c.b16 %v40, %v39
    %v45 = vunpack.c.l.b16 %v27
    %v46 = vunpack.c.l.b16 %v28
    %v47 = vpack.c.b16 %v46, %v45
    %vm48 = vcmask 97280
    %v50 = vsel %vm48, %v41, 0
    %v53 = vsel %vm48, %v42, 0
    %vm55 = vcmask 1045504
    %v57 = vsel %vm55, %v47, 0
    %59 = vmatprep.subr.bf16.mxu0 0
    %60 = vmatpush1.bf16.msra.mxu0 %v57
    %61 = vmatprep.subr.bf16.mxu0 0
    %62 = vmatpush1.bf16.msra.mxu0 0
    %63 = vmatprep.subr.bf16.mxu0 0
    %64 = vmatpush1.bf16.msra.mxu0 0
    %65 = vmatprep.subr.bf16.mxu0 0
    %66 = vmatpush1.bf16.msra.mxu0 0
    %67 = vmatprep.subr.bf16.mxu0 0
    %68 = vmatpush1.bf16.msra.mxu0 0
    %69 = vmatprep.subr.bf16.mxu0 0
    %70 = vmatpush1.bf16.msra.mxu0 0
    %71 = vmatprep.subr.bf16.mxu0 0
    %72 = vmatpush1.bf16.msra.mxu0 0
    %73 = vmatprep.subr.bf16.mxu0 0
    %74 = vmatpush1.bf16.msra.mxu0 0
    %75 = vmatprep.subr.bf16.mxu0 0
    %76 = vmatpush1.bf16.msra.mxu0 0
    %77 = vmatprep.subr.bf16.mxu0 0
    %78 = vmatpush1.bf16.msra.mxu0 0
    %79 = vmatprep.subr.bf16.mxu0 0
    %80 = vmatpush1.bf16.msra.mxu0 0
    %81 = vmatprep.subr.bf16.mxu0 0
    %82 = vmatpush1.bf16.msra.mxu0 0
    %83 = vmatprep.subr.bf16.mxu0 0
    %84 = vmatpush1.bf16.msra.mxu0 0
    %85 = vmatprep.subr.bf16.mxu0 0
    %86 = vmatpush1.bf16.msra.mxu0 0
    %87 = vmatprep.subr.bf16.mxu0 0
    %88 = vmatpush1.bf16.msra.mxu0 0
    %89 = vmatprep.subr.bf16.mxu0 0
    %90 = vmatpush1.bf16.msra.mxu0 0
    %91 = vmatprep.mubr.bf16.mxu0 0
    %92 = vmatmul.mubr.bf16.gmra.mrb[0].mxu0 %v50
    %v93 = vpop.f32.mrb[0].mxu0
    %v94 = vadd.f32 %v32, %v93
    %v95 = vpop.f32.mrb[0].mxu0
    %v96 = vpop.f32.mrb[0].mxu0
    %v97 = vadd.f32 %v32, %v96
    %v98 = vpop.f32.mrb[0].mxu0
    %99 = vmatprep.mubr.bf16.mxu0 0
    %100 = vmatmul.mubr.bf16.gmra.mrb[0].mxu0 %v53
    %v101 = vpop.f32.mrb[0].mxu0
    %v102 = vadd.f32 %v32, %v101
    %v103 = vpop.f32.mrb[0].mxu0
    %v104 = vpop.f32.mrb[0].mxu0
    %v105 = vadd.f32 %v32, %v104
    %v106 = vpop.f32.mrb[0].mxu0
    %107 = vdwg.mxu0
    %v108 = vmax.f32 %v94, 0.0
    %v109 = vmax.f32 %v97, 0.0
    %v110 = vmax.f32 %v102, 0.0
    %v111 = vmax.f32 %v105, 0.0
    %v112 = vlaneseq
    %v113 = vshrl.u32 %v112, 7
    %v114 = vadd.s32 %v113, 8
    %v115 = vadd.s32 %v113, 16
    %v116 = vadd.s32 %v113, 24
    %v117 = vand.u32 %v113, 15
    %v118 = vand.u32 %v114, 15
    %v119 = vand.u32 %v115, 15
    %v120 = vand.u32 %v116, 15
    %vm121 = vcmp.ne.s32.totalorder %v117, 0
    %vm122 = vcmp.ne.s32.totalorder %v118, 0
    %vm123 = vcmp.ne.s32.totalorder %v119, 0
    %vm124 = vcmp.ne.s32.totalorder %v120, 0
    %v125 = vsel %vm121, 1, 0
    %v126 = vsel %vm122, 1, 0
    %v127 = vsel %vm123, 1, 0
    %v128 = vsel %vm124, 1, 0
    %v129 = vcvt.s32.f32 %v125
    %v130 = vcvt.s32.f32 %v126
    %v131 = vcvt.s32.f32 %v127
    %v132 = vcvt.s32.f32 %v128
    %vm133 = vcmp.ne.s32.totalorder %v117, 15
    %vm134 = vcmp.ne.s32.totalorder %v118, 15
    %vm135 = vcmp.ne.s32.totalorder %v119, 15
    %vm136 = vcmp.ne.s32.totalorder %v120, 15
    %v137 = vsel %vm133, 1, 0
    %v138 = vsel %vm134, 1, 0
    %v139 = vsel %vm135, 1, 0
    %v140 = vsel %vm136, 1, 0
    %v141 = vcvt.s32.f32 %v137
    %v142 = vcvt.s32.f32 %v138
    %v143 = vcvt.s32.f32 %v139
    %v144 = vcvt.s32.f32 %v140
    %v145 = vrot.slane %v108, 7
    %v146 = vrot.slane %v109, 7
    %v147 = vrot.slane %v110, 7
    %v148 = vrot.slane %v111, 7
    %vm149 = vcmp.lt.s32.totalorder %v113, 1
    %v150 = vsel %vm149, %v147, %v148
    %v151 = vsel %vm149, %v146, %v147
    %v152 = vsel %vm149, %v145, %v146
    %v153 = vsel %vm149, %v148, %v145
    %v154 = vmul.f32 %v153, %v129
    %v155 = vmul.f32 %v152, %v130
    %v156 = vmul.f32 %v151, %v131
    %v157 = vmul.f32 %v150, %v132
    %v158 = vrot.slane %v108, 1
    %v159 = vrot.slane %v109, 1
    %v160 = vrot.slane %v110, 1
    %v161 = vrot.slane %v111, 1
    %vm162 = vcmp.lt.s32.totalorder %v113, 7
    %v163 = vsel %vm162, %v160, %v161
    %v164 = vsel %vm162, %v159, %v160
    %v165 = vsel %vm162, %v158, %v159
    %v166 = vsel %vm162, %v161, %v158
    %v167 = vmul.f32 %v165, %v141
    %v168 = vmul.f32 %v164, %v142
    %v169 = vmul.f32 %v163, %v143
    %v170 = vmul.f32 %v166, %v144
    %175 = vrot.lane.b32.xlu0 %v108, 32
    %v176 = vpop.permute.xlu0 %175
    %177 = vrot.lane.b32.xlu0 %v109, 32
    %v178 = vpop.permute.xlu0 %177
    %179 = vrot.lane.b32.xlu0 %v110, 32
    %v180 = vpop.permute.xlu0 %179
    %181 = vrot.lane.b32.xlu0 %v111, 32
    %v182 = vpop.permute.xlu0 %181
    %191 = vrot.lane.b32.xlu0 %v167, 64
    %v192 = vpop.permute.xlu0 %191
    %193 = vrot.lane.b32.xlu0 %v168, 64
    %v194 = vpop.permute.xlu0 %193
    %195 = vrot.lane.b32.xlu0 %v169, 64
    %v196 = vpop.permute.xlu0 %195
    %197 = vrot.lane.b32.xlu0 %v170, 64
    %v198 = vpop.permute.xlu0 %197
    %vm203 = vcmask 261120
    %v204 = vsel %vm203, %v154, %v176
    %v205 = vsel %vm203, %v155, %v178
    %v206 = vsel %vm203, %v156, %v180
    %v207 = vsel %vm203, %v157, %v182
    %vm208 = vcmask 523264
    %v209 = vsel %vm208, %v204, %v192
    %v210 = vsel %vm208, %v205, %v194
    %v211 = vsel %vm208, %v206, %v196
    %v212 = vsel %vm208, %v207, %v198
    %v213 = vpack.c.bf16 %v210, %v209
    %v214 = vpack.c.bf16 %v212, %v211
    %v215 = vld [vmem:[%s2] sm:$0xf]
    %v216 = vld [vmem:[%s2 + $0x4] sm:$0xf]
    %v217 = vld [vmem:[%s2 + $0x8] sm:$0xf]
    %v218 = vld [vmem:[%s2 + $0xc] sm:$0xf]
    %v219 = vld [vmem:[%s2 + $0x10] sm:$0xf]
    %v220 = vld [vmem:[%s2 + $0x14] sm:$0xf]
    %v221 = vld [vmem:[%s2 + $0x18] sm:$0xf]
    %v222 = vld [vmem:[%s2 + $0x1c] sm:$0xf]
    %v223 = vld [vmem:[%s2 + $0x20] sm:$0xf]
    %v224 = vld [vmem:[%s2 + $0x24] sm:$0xf]
    %v225 = vld [vmem:[%s2 + $0x28] sm:$0xf]
    %v226 = vld [vmem:[%s2 + $0x2c] sm:$0xf]
    %v227 = vlaneseq
    %v228 = vshrl.u32 %v227, 7
    %v229 = vsub.s32 1, %v228
    %v230 = vrot.slane %v22, %v229
    %v243 = vunpack.c.l.b16 %v215
    %v244 = vunpack.c.l.b16 %v216
    %v245 = vunpack.c.l.b16 %v217
    %v246 = vunpack.c.l.b16 %v218
    %v247 = vunpack.c.l.b16 %v219
    %v248 = vunpack.c.l.b16 %v220
    %v249 = vunpack.c.l.b16 %v221
    %v250 = vunpack.c.l.b16 %v222
    %v251 = vunpack.c.l.b16 %v223
    %v252 = vunpack.c.l.b16 %v224
    %v253 = vunpack.c.l.b16 %v225
    %v254 = vunpack.c.l.b16 %v226
    %v255 = vpack.c.b16 %v244, %v243
    %v256 = vpack.c.b16 %v246, %v245
    %v257 = vpack.c.b16 %v248, %v247
    %v258 = vpack.c.b16 %v250, %v249
    %v259 = vpack.c.b16 %v252, %v251
    %v260 = vpack.c.b16 %v254, %v253
    %vm267 = vcmask 785408
    %v269 = vsel %vm267, %v213, 0
    %v272 = vsel %vm267, %v214, 0
    %274 = vmatprep.subr.bf16.mxu0 0
    %275 = vmatpush1.bf16.msra.mxu0 %v255
    %276 = vmatprep.subr.bf16.mxu0 0
    %277 = vmatpush1.bf16.msra.mxu0 %v256
    %278 = vmatprep.subr.bf16.mxu0 0
    %279 = vmatpush1.bf16.msra.mxu0 %v257
    %280 = vmatprep.subr.bf16.mxu0 0
    %281 = vmatpush1.bf16.msra.mxu0 %v258
    %282 = vmatprep.subr.bf16.mxu0 0
    %283 = vmatpush1.bf16.msra.mxu0 %v259
    %284 = vmatprep.subr.bf16.mxu0 0
    %285 = vmatpush1.bf16.msra.mxu0 %v260
    %286 = vmatprep.subr.bf16.mxu0 0
    %287 = vmatpush1.bf16.msra.mxu0 0
    %288 = vmatprep.subr.bf16.mxu0 0
    %289 = vmatpush1.bf16.msra.mxu0 0
    %290 = vmatprep.subr.bf16.mxu0 0
    %291 = vmatpush1.bf16.msra.mxu0 0
    %292 = vmatprep.subr.bf16.mxu0 0
    %293 = vmatpush1.bf16.msra.mxu0 0
    %294 = vmatprep.subr.bf16.mxu0 0
    %295 = vmatpush1.bf16.msra.mxu0 0
    %296 = vmatprep.subr.bf16.mxu0 0
    %297 = vmatpush1.bf16.msra.mxu0 0
    %298 = vmatprep.subr.bf16.mxu0 0
    %299 = vmatpush1.bf16.msra.mxu0 0
    %300 = vmatprep.subr.bf16.mxu0 0
    %301 = vmatpush1.bf16.msra.mxu0 0
    %302 = vmatprep.subr.bf16.mxu0 0
    %303 = vmatpush1.bf16.msra.mxu0 0
    %304 = vmatprep.subr.bf16.mxu0 0
    %305 = vmatpush1.bf16.msra.mxu0 0
    %306 = vmatprep.mubr.bf16.mxu0 0
    %307 = vmatmul.mubr.bf16.gmra.mrb[0].mxu0 %v269
    %v308 = vpop.f32.mrb[0].mxu0
    %v309 = vadd.f32 %v230, %v308
    %v310 = vpop.f32.mrb[0].mxu0
    %v311 = vpop.f32.mrb[0].mxu0
    %v312 = vadd.f32 %v230, %v311
    %v313 = vpop.f32.mrb[0].mxu0
    %314 = vmatprep.mubr.bf16.mxu0 0
    %315 = vmatmul.mubr.bf16.gmra.mrb[0].mxu0 %v272
    %v316 = vpop.f32.mrb[0].mxu0
    %v317 = vadd.f32 %v230, %v316
    %v318 = vpop.f32.mrb[0].mxu0
    %v319 = vpop.f32.mrb[0].mxu0
    %v320 = vadd.f32 %v230, %v319
    %v321 = vpop.f32.mrb[0].mxu0
    %322 = vdwg.mxu0
    %v323 = vmax.f32 %v309, 0.0
    %v324 = vmax.f32 %v312, 0.0
    %v325 = vmax.f32 %v317, 0.0
    %v326 = vmax.f32 %v320, 0.0
    %v327 = vpack.c.bf16 %v324, %v323
    %v328 = vpack.c.bf16 %v326, %v325
    %v329 = vld [vmem:[%s3] sm:$0xf]
    %v330 = vld [vmem:[%s3 + $0x4] sm:$0xf]
    %v331 = vld [vmem:[%s3 + $0x8] sm:$0xf]
    %v332 = vld [vmem:[%s3 + $0xc] sm:$0xf]
    %v333 = vld [vmem:[%s3 + $0x10] sm:$0xf]
    %v334 = vld [vmem:[%s3 + $0x14] sm:$0xf]
    %v335 = vld [vmem:[%s3 + $0x18] sm:$0xf]
    %v336 = vld [vmem:[%s3 + $0x1c] sm:$0xf]
    %v345 = vunpack.c.l.b16 %v329
    %v346 = vunpack.c.l.b16 %v330
    %v347 = vunpack.c.l.b16 %v331
    %v348 = vunpack.c.l.b16 %v332
    %v349 = vunpack.c.l.b16 %v333
    %v350 = vunpack.c.l.b16 %v334
    %v351 = vunpack.c.l.b16 %v335
    %v352 = vunpack.c.l.b16 %v336
    %v353 = vpack.c.b16 %v346, %v345
    %v354 = vpack.c.b16 %v348, %v347
    %v355 = vpack.c.b16 %v350, %v349
    %v356 = vpack.c.b16 %v352, %v351
    %v362 = vsel %vm208, %v327, 0
    %v365 = vsel %vm208, %v328, 0
    %367 = vmatprep.subr.bf16.mxu0 0
    %368 = vmatpush1.bf16.msra.mxu0 %v353
    %369 = vmatprep.subr.bf16.mxu0 0
    %370 = vmatpush1.bf16.msra.mxu0 %v354
    %371 = vmatprep.subr.bf16.mxu0 0
    %372 = vmatpush1.bf16.msra.mxu0 %v355
    %373 = vmatprep.subr.bf16.mxu0 0
    %374 = vmatpush1.bf16.msra.mxu0 %v356
    %375 = vmatprep.subr.bf16.mxu0 0
    %376 = vmatpush1.bf16.msra.mxu0 0
    %377 = vmatprep.subr.bf16.mxu0 0
    %378 = vmatpush1.bf16.msra.mxu0 0
    %379 = vmatprep.subr.bf16.mxu0 0
    %380 = vmatpush1.bf16.msra.mxu0 0
    %381 = vmatprep.subr.bf16.mxu0 0
    %382 = vmatpush1.bf16.msra.mxu0 0
    %383 = vmatprep.subr.bf16.mxu0 0
    %384 = vmatpush1.bf16.msra.mxu0 0
    %385 = vmatprep.subr.bf16.mxu0 0
    %386 = vmatpush1.bf16.msra.mxu0 0
    %387 = vmatprep.subr.bf16.mxu0 0
    %388 = vmatpush1.bf16.msra.mxu0 0
    %389 = vmatprep.subr.bf16.mxu0 0
    %390 = vmatpush1.bf16.msra.mxu0 0
    %391 = vmatprep.subr.bf16.mxu0 0
    %392 = vmatpush1.bf16.msra.mxu0 0
    %393 = vmatprep.subr.bf16.mxu0 0
    %394 = vmatpush1.bf16.msra.mxu0 0
    %395 = vmatprep.subr.bf16.mxu0 0
    %396 = vmatpush1.bf16.msra.mxu0 0
    %397 = vmatprep.subr.bf16.mxu0 0
    %398 = vmatpush1.bf16.msra.mxu0 0
    %399 = vmatprep.mubr.bf16.mxu0 0
    %400 = vmatmul.mubr.bf16.gmra.mrb[0].mxu0 %v362
    %v401 = vpop.f32.mrb[0].mxu0
    %v402 = vadd.f32 0.0, %v401
    %v403 = vpop.f32.mrb[0].mxu0
    %v404 = vpop.f32.mrb[0].mxu0
    %v405 = vadd.f32 0.0, %v404
    %v406 = vpop.f32.mrb[0].mxu0
    %407 = vmatprep.mubr.bf16.mxu0 0
    %408 = vmatmul.mubr.bf16.gmra.mrb[0].mxu0 %v365
    %v409 = vpop.f32.mrb[0].mxu0
    %v410 = vadd.f32 0.0, %v409
    %v411 = vpop.f32.mrb[0].mxu0
    %v412 = vpop.f32.mrb[0].mxu0
    %v413 = vadd.f32 0.0, %v412
    %v414 = vpop.f32.mrb[0].mxu0
    %415 = vdwg.mxu0
    %v416 = vlaneseq
    %v417 = vand.u32 %v416, 127
    %v418 = vand.u32 %v417, 15
    %vm419 = vcmp.eq.s32.totalorder %v418, %v117
    %vm420 = vcmp.eq.s32.totalorder %v418, %v118
    %vm421 = vcmp.eq.s32.totalorder %v418, %v119
    %vm422 = vcmp.eq.s32.totalorder %v418, %v120
    %v423 = vsel %vm419, %v402, 0.0
    %v424 = vsel %vm420, %v405, 0.0
    %v425 = vsel %vm421, %v410, 0.0
    %v426 = vsel %vm422, %v413, 0.0
    %v427 = vadd.s32 %v113, 32
    %v428 = vadd.s32 %v113, 40
    %v429 = vshra.s32 %v113, 4
    %v430 = vshra.s32 %v114, 4
    %v431 = vshra.s32 %v115, 4
    %v432 = vshra.s32 %v116, 4
    %v433 = vshra.s32 %v427, 4
    %v434 = vshra.s32 %v428, 4
    %vm435 = vcmp.eq.s32.totalorder %v429, %v417
    %vm436 = vcmp.eq.s32.totalorder %v430, %v417
    %vm437 = vcmp.eq.s32.totalorder %v431, %v417
    %vm438 = vcmp.eq.s32.totalorder %v432, %v417
    %vm439 = vcmp.eq.s32.totalorder %v433, %v417
    %vm440 = vcmp.eq.s32.totalorder %v434, %v417
    %v441 = vsel %vm435, 1, 0
    %v442 = vsel %vm436, 1, 0
    %v443 = vsel %vm437, 1, 0
    %v444 = vsel %vm438, 1, 0
    %v445 = vsel %vm439, 1, 0
    %v446 = vsel %vm440, 1, 0
    %v447 = vcvt.s32.f32 %v441
    %v448 = vcvt.s32.f32 %v442
    %v449 = vcvt.s32.f32 %v443
    %v450 = vcvt.s32.f32 %v444
    %v451 = vcvt.s32.f32 %v445
    %v452 = vcvt.s32.f32 %v446
    %vm453 = vcmask 392192
    %v455 = vsel %vm453, %v423, 0
    %v458 = vsel %vm453, %v424, 0
    %v461 = vsel %vm453, %v425, 0
    %v464 = vsel %vm453, %v426, 0
    %466 = vmatprep.subr.mxu0 0.0
    %467 = vmatpush1.msra.mxu0 %v447
    %468 = vmatprep.subr.mxu0 0.0
    %469 = vmatpush1.msra.mxu0 %v448
    %470 = vmatprep.subr.mxu0 0.0
    %471 = vmatpush1.msra.mxu0 %v449
    %472 = vmatprep.subr.mxu0 0.0
    %473 = vmatpush1.msra.mxu0 %v450
    %474 = vmatprep.subr.mxu0 0.0
    %475 = vmatpush1.msra.mxu0 %v451
    %476 = vmatprep.subr.mxu0 0.0
    %477 = vmatpush1.msra.mxu0 %v452
    %478 = vmatprep.subr.mxu0 0.0
    %479 = vmatpush1.msra.mxu0 0.0
    %480 = vmatprep.subr.mxu0 0.0
    %481 = vmatpush1.msra.mxu0 0.0
    %482 = vmatprep.subr.mxu0 0.0
    %483 = vmatpush1.msra.mxu0 0.0
    %484 = vmatprep.subr.mxu0 0.0
    %485 = vmatpush1.msra.mxu0 0.0
    %486 = vmatprep.subr.mxu0 0.0
    %487 = vmatpush1.msra.mxu0 0.0
    %488 = vmatprep.subr.mxu0 0.0
    %489 = vmatpush1.msra.mxu0 0.0
    %490 = vmatprep.subr.mxu0 0.0
    %491 = vmatpush1.msra.mxu0 0.0
    %492 = vmatprep.subr.mxu0 0.0
    %493 = vmatpush1.msra.mxu0 0.0
    %494 = vmatprep.subr.mxu0 0.0
    %495 = vmatpush1.msra.mxu0 0.0
    %496 = vmatprep.subr.mxu0 0.0
    %497 = vmatpush1.msra.mxu0 0.0
    %498 = vmatprep.subr.mxu0 0.0
    %499 = vmatpush1.msra.mxu0 0.0
    %500 = vmatprep.subr.mxu0 0.0
    %501 = vmatpush1.msra.mxu0 0.0
    %502 = vmatprep.subr.mxu0 0.0
    %503 = vmatpush1.msra.mxu0 0.0
    %504 = vmatprep.subr.mxu0 0.0
    %505 = vmatpush1.msra.mxu0 0.0
    %506 = vmatprep.subr.mxu0 0.0
    %507 = vmatpush1.msra.mxu0 0.0
    %508 = vmatprep.subr.mxu0 0.0
    %509 = vmatpush1.msra.mxu0 0.0
    %510 = vmatprep.subr.mxu0 0.0
    %511 = vmatpush1.msra.mxu0 0.0
    %512 = vmatprep.subr.mxu0 0.0
    %513 = vmatpush1.msra.mxu0 0.0
    %514 = vmatprep.subr.mxu0 0.0
    %515 = vmatpush1.msra.mxu0 0.0
    %516 = vmatprep.subr.mxu0 0.0
    %517 = vmatpush1.msra.mxu0 0.0
    %518 = vmatprep.subr.mxu0 0.0
    %519 = vmatpush1.msra.mxu0 0.0
    %520 = vmatprep.subr.mxu0 0.0
    %521 = vmatpush1.msra.mxu0 0.0
    %522 = vmatprep.subr.mxu0 0.0
    %523 = vmatpush1.msra.mxu0 0.0
    %524 = vmatprep.subr.mxu0 0.0
    %525 = vmatpush1.msra.mxu0 0.0
    %526 = vmatprep.subr.mxu0 0.0
    %527 = vmatpush1.msra.mxu0 0.0
    %528 = vmatprep.subr.mxu0 0.0
    %529 = vmatpush1.msra.mxu0 0.0
    %530 = vmatprep.mubr.f32.mxu0 0.0
    %531 = vmatmul.mubr.f32.gmra.mrb[0].mxu0 %v455
    %v532 = vpop.f32.mrb[0].mxu0
    %v533 = vadd.f32 0.0, %v532
    %v534 = vpop.f32.mrb[0].mxu0
    %535 = vmatprep.mubr.f32.mxu0 0.0
    %536 = vmatmul.mubr.f32.gmra.mrb[0].mxu0 %v458
    %v537 = vpop.f32.mrb[0].mxu0
    %v538 = vadd.f32 0.0, %v537
    %v539 = vpop.f32.mrb[0].mxu0
    %540 = vmatprep.mubr.f32.mxu0 0.0
    %541 = vmatmul.mubr.f32.gmra.mrb[0].mxu0 %v461
    %v542 = vpop.f32.mrb[0].mxu0
    %v543 = vadd.f32 0.0, %v542
    %v544 = vpop.f32.mrb[0].mxu0
    %545 = vmatprep.mubr.f32.mxu0 0.0
    %546 = vmatmul.mubr.f32.gmra.mrb[0].mxu0 %v464
    %v547 = vpop.f32.mrb[0].mxu0
    %v548 = vadd.f32 0.0, %v547
    %v549 = vpop.f32.mrb[0].mxu0
    %550 = vdwg.mxu0
    %v551 = vshra.s32 %v417, 4
    %vm552 = vcmp.eq.s32.totalorder %v113, %v551
    %v553 = vsel %vm552, 1, 0
    %v554 = vcvt.s32.f32 %v553
    %v555 = vlaneseq
    %v556 = vshrl.u32 %v555, 7
    %v557 = vsub.s32 2, %v556
    %v558 = vrot.slane %v22, %v557
    %v560 = vsel %vm203, %v554, 0
    %562 = vmatprep.subr.mxu0 0.0
    %563 = vmatpush1.msra.mxu0 %v533
    %564 = vmatprep.subr.mxu0 0.0
    %565 = vmatpush1.msra.mxu0 %v538
    %566 = vmatprep.subr.mxu0 0.0
    %567 = vmatpush1.msra.mxu0 %v543
    %568 = vmatprep.subr.mxu0 0.0
    %569 = vmatpush1.msra.mxu0 %v548
    %570 = vmatprep.subr.mxu0 0.0
    %571 = vmatpush1.msra.mxu0 0.0
    %572 = vmatprep.subr.mxu0 0.0
    %573 = vmatpush1.msra.mxu0 0.0
    %574 = vmatprep.subr.mxu0 0.0
    %575 = vmatpush1.msra.mxu0 0.0
    %576 = vmatprep.subr.mxu0 0.0
    %577 = vmatpush1.msra.mxu0 0.0
    %578 = vmatprep.subr.mxu0 0.0
    %579 = vmatpush1.msra.mxu0 0.0
    %580 = vmatprep.subr.mxu0 0.0
    %581 = vmatpush1.msra.mxu0 0.0
    %582 = vmatprep.subr.mxu0 0.0
    %583 = vmatpush1.msra.mxu0 0.0
    %584 = vmatprep.subr.mxu0 0.0
    %585 = vmatpush1.msra.mxu0 0.0
    %586 = vmatprep.subr.mxu0 0.0
    %587 = vmatpush1.msra.mxu0 0.0
    %588 = vmatprep.subr.mxu0 0.0
    %589 = vmatpush1.msra.mxu0 0.0
    %590 = vmatprep.subr.mxu0 0.0
    %591 = vmatpush1.msra.mxu0 0.0
    %592 = vmatprep.subr.mxu0 0.0
    %593 = vmatpush1.msra.mxu0 0.0
    %594 = vmatprep.subr.mxu0 0.0
    %595 = vmatpush1.msra.mxu0 0.0
    %596 = vmatprep.subr.mxu0 0.0
    %597 = vmatpush1.msra.mxu0 0.0
    %598 = vmatprep.subr.mxu0 0.0
    %599 = vmatpush1.msra.mxu0 0.0
    %600 = vmatprep.subr.mxu0 0.0
    %601 = vmatpush1.msra.mxu0 0.0
    %602 = vmatprep.subr.mxu0 0.0
    %603 = vmatpush1.msra.mxu0 0.0
    %604 = vmatprep.subr.mxu0 0.0
    %605 = vmatpush1.msra.mxu0 0.0
    %606 = vmatprep.subr.mxu0 0.0
    %607 = vmatpush1.msra.mxu0 0.0
    %608 = vmatprep.subr.mxu0 0.0
    %609 = vmatpush1.msra.mxu0 0.0
    %610 = vmatprep.subr.mxu0 0.0
    %611 = vmatpush1.msra.mxu0 0.0
    %612 = vmatprep.subr.mxu0 0.0
    %613 = vmatpush1.msra.mxu0 0.0
    %614 = vmatprep.subr.mxu0 0.0
    %615 = vmatpush1.msra.mxu0 0.0
    %616 = vmatprep.subr.mxu0 0.0
    %617 = vmatpush1.msra.mxu0 0.0
    %618 = vmatprep.subr.mxu0 0.0
    %619 = vmatpush1.msra.mxu0 0.0
    %620 = vmatprep.subr.mxu0 0.0
    %621 = vmatpush1.msra.mxu0 0.0
    %622 = vmatprep.subr.mxu0 0.0
    %623 = vmatpush1.msra.mxu0 0.0
    %624 = vmatprep.subr.mxu0 0.0
    %625 = vmatpush1.msra.mxu0 0.0
    %626 = vmatprep.mubr.f32.mxu0 0.0
    %627 = vmatmul.mubr.f32.gmra.mrb[0].mxu0 %v560
    %v628 = vpop.f32.mrb[0].mxu0
    %v629 = vadd.f32 %v558, %v628
    %v630 = vpop.f32.mrb[0].mxu0
    %631 = vdwg.mxu0
    %vm632 = vcmask 17408
    %633 = vst.msk [vmem:[#allocation2] sm:$0x3] %vm632, %v629
    // Predicated region
    $region22: #{eegnet_forward.1} parent=1 // pred_check
      _
    $region23: #{eegnet_forward.1} parent=1 // pred_check_branch
      %635 = sbr.rel (0) target = $region25
    $region24: #{eegnet_forward.1} parent=1 // pred_region
      %s637 = ssub.s32 32, 32
      %638 = vsyncadd [#allocation3], %s637
      %s640 = sshll.u32 [#allocation2], 4
      %s641 = int_to_ptr.vmem [resolvable:$true] %s640
      %643 = dma.vmem_to_hbm [thread:$0]  %s641, 32, %s5, [#allocation3]
    $region25: #{eegnet_forward.1} parent=1 // pred_fallthru
      _
    // Predicated region
    $region26: #{eegnet_forward.1} parent=1 // pred_check
      _
    $region27: #{eegnet_forward.1} parent=1 // pred_check_branch
      %645 = sbr.rel (0) target = $region29
    $region28: #{eegnet_forward.1} parent=1 // pred_region
      %646 = dma.done [#allocation3], 32
    $region29: #{eegnet_forward.1} parent=1 // pred_fallthru
      _
    %647 = vsyncpa [#allocation3], 1

</llo_original>
